<compile_context>
chip_gen: v7x
topology: tpu7x:2x2x1
jax: 0.10.0
libtpu: 0.0.40
codegen_flags: <defaults>
</compile_context>

<pallas_src>
import functools

import jax
import jax.numpy as jnp
import numpy as np
from jax.experimental import pallas as pl
from jax.experimental.pallas import tpu as pltpu


def _warp_kernel(src_ref, locs_ref, out_ref, *, H, W):
    """src_ref: (Nb, C*H, W) f32, locs_ref: (Nb, 2, Pp) f32, out_ref: (Nb, C, Pp).

    locs channel 0 = sample row (y), channel 1 = sample col (x), pixel space.
    """
    Nb, CH, _ = src_ref.shape
    C = CH // H
    Pp = locs_ref.shape[-1]

    locs = locs_ref[...]                               # (Nb, 2, Pp)
    iy = locs[:, 0:1, :]                               # (Nb, 1, Pp)
    ix = locs[:, 1:2, :]

    y0f = jnp.floor(iy)
    x0f = jnp.floor(ix)
    fy = iy - y0f
    fx = ix - x0f
    y0 = y0f.astype(jnp.int32)
    x0 = x0f.astype(jnp.int32)
    y1 = y0 + 1
    x1 = x0 + 1

    # grid_sample padding_mode='zeros': out-of-range corners contribute 0.
    # (The one-hot match below already misses for out-of-range indices; the
    # where() keeps weights clean even for extreme flow values.)
    wy0 = jnp.where((y0 >= 0) & (y0 < H), 1.0 - fy, 0.0)   # (Nb, 1, Pp)
    wy1 = jnp.where((y1 >= 0) & (y1 < H), fy, 0.0)
    wx0 = jnp.where((x0 >= 0) & (x0 < W), 1.0 - fx, 0.0)
    wx1 = jnp.where((x1 >= 0) & (x1 < W), fx, 0.0)

    # Row / column selection matrices: <= 2 nonzeros per destination column.
    y_src = jax.lax.broadcasted_iota(jnp.int32, (1, H, Pp), 1)
    x_src = jax.lax.broadcasted_iota(jnp.int32, (1, W, Pp), 1)
    Ry = jnp.where(y_src == y0, wy0, 0.0) + jnp.where(y_src == y1, wy1, 0.0)
    Cx = jnp.where(x_src == x0, wx0, 0.0) + jnp.where(x_src == x1, wx1, 0.0)
    # Ry: (Nb, H, Pp), Cx: (Nb, W, Pp)

    # Horizontal gather on the MXU:
    #   T[b, c*H + y, p] = sum_x src[b, c, y, x] * Cx[b, x, p]
    src = src_ref[...]                                  # (Nb, C*H, W)
    T = jnp.einsum('bmw,bwp->bmp', src, Cx,
                   preferred_element_type=jnp.float32)  # (Nb, C*H, Pp)

    # Vertical gather: weighted sum over the H candidate rows (cheap VPU work).
    for c in range(C):
        Tc = T[:, c * H:(c + 1) * H, :]                 # (Nb, H, Pp)
        out_c = jnp.sum(Tc * Ry, axis=1, keepdims=True)  # (Nb, 1, Pp)
        out_ref[:, c:c + 1, :] = out_c.astype(out_ref.dtype)


def spatial_transformer(src, flow, *, block_batch=None,
                        vmem_budget_bytes=8 << 20):
    """Bilinear warp matching SpatialTransformer.forward (2-D, zeros padding).

    src:  (N, C, H, W) float
    flow: (N, 2, H, W) float; channel 0 = row displacement, 1 = col displacement
    """
    N, C, H, W = src.shape
    assert flow.shape == (N, 2, H, W)
    P = H * W
    Pp = -(-P // 128) * 128          # lane-dense destination axis (mult. of 128)

    # Sample locations in pixel space.  With align_corners=True the module's
    # normalize / de-normalize round trip is the identity, so new_locs is
    # simply grid + flow.  This tiny elementwise add fuses with the
    # reshape/pad below and removes the grid array (and its DMA) entirely.
    gy = jnp.arange(H, dtype=jnp.float32)[:, None]
    gx = jnp.arange(W, dtype=jnp.float32)[None, :]
    locs = jnp.stack([gy + flow[:, 0].astype(jnp.float32),
                      gx + flow[:, 1].astype(jnp.float32)], axis=1)  # (N,2,H,W)
    locs = locs.reshape(N, 2, P)
    src_r = src.reshape(N, C * H, W).astype(jnp.float32)

    # Choose the batch block Nb: big enough to amortize per-step overhead,
    # small enough to fit the per-step working set in scoped VMEM, and capped
    # so there are >= 2 grid steps (lets v7x shard the batch across its 2 TCs).
    per_elem = 4 * (2 * (C * H * W + 2 * Pp + C * Pp)       # dbl-buffered blocks
                    + (H + W + C * H) * Pp)                  # Ry + Cx + T temps
    if block_batch is None:
        Nb = max(1, min(vmem_budget_bytes // per_elem, (N + 1) // 2))
    else:
        Nb = max(1, block_batch)
    Nb = min(Nb, N)
    n_steps = -(-N // Nb)
    N_pad = n_steps * Nb

    if N_pad != N:
        src_r = jnp.pad(src_r, ((0, N_pad - N), (0, 0), (0, 0)))
        locs = jnp.pad(locs, ((0, N_pad - N), (0, 0), (0, 0)))
    if Pp != P:
        locs = jnp.pad(locs, ((0, 0), (0, 0), (0, Pp - P)))

    flops = 2 * N_pad * (C * H) * W * Pp + 8 * N_pad * C * H * Pp
    bytes_accessed = 4 * N_pad * (C * H * W + 2 * Pp + C * Pp)

    out = pl.pallas_call(
        functools.partial(_warp_kernel, H=H, W=W),
        out_shape=jax.ShapeDtypeStruct((N_pad, C, Pp), jnp.float32),
        grid_spec=pltpu.PrefetchScalarGridSpec(
            num_scalar_prefetch=0,
            grid=(n_steps,),
            in_specs=[
                pl.BlockSpec((Nb, C * H, W), lambda n: (n, 0, 0)),
                pl.BlockSpec((Nb, 2, Pp), lambda n: (n, 0, 0)),
            ],
            out_specs=pl.BlockSpec((Nb, C, Pp), lambda n: (n, 0, 0)),
        ),
        compiler_params=pltpu.CompilerParams(
            dimension_semantics=("parallel",)),
        cost_estimate=pl.CostEstimate(
            flops=flops, transcendentals=0, bytes_accessed=bytes_accessed),
    )(src_r, locs)

    return out[:N, :, :P].reshape(N, C, H, W)


def reference(src, flow):
    """Pure-JAX reference of F.grid_sample(bilinear, align_corners=True, zeros)."""
    N, C, H, W = src.shape
    gy = jnp.arange(H, dtype=jnp.float32)[:, None]
    gx = jnp.arange(W, dtype=jnp.float32)[None, :]
    iy = gy + flow[:, 0]
    ix = gx + flow[:, 1]
    y0 = jnp.floor(iy)
    x0 = jnp.floor(ix)
    fy = iy - y0
    fx = ix - x0
    src_flat = src.reshape(N, C, H * W)
    out = jnp.zeros_like(src)
    for dy, dx in [(0, 0), (0, 1), (1, 0), (1, 1)]:
        yc = y0 + dy
        xc = x0 + dx
        w = (fy if dy else 1.0 - fy) * (fx if dx else 1.0 - fx)
        valid = (yc >= 0) & (yc < H) & (xc >= 0) & (xc < W)
        yci = jnp.clip(yc, 0, H - 1).astype(jnp.int32)
        xci = jnp.clip(xc, 0, W - 1).astype(jnp.int32)
        flat = (yci * W + xci).reshape(N, 1, H * W)
        vals = jnp.take_along_axis(src_flat, flat, axis=2).reshape(N, C, H, W)
        out = out + vals * (w * valid.astype(jnp.float32))[:, None]
    return out


if __name__ == "__main__":
    N, C, H, W = 2, 4, 16, 16
    key = jax.random.PRNGKey(0)
    k1, k2 = jax.random.split(key)
    src = jax.random.normal(k1, (N, C, H, W), dtype=jnp.float32)
    flow = 3.0 * jax.random.normal(k2, (N, 2, H, W), dtype=jnp.float32)

    out = spatial_transformer(src, flow)
    out = jax.block_until_ready(out)

    ref = jax.block_until_ready(reference(src, flow))
    assert out.shape == (N, C, H, W)
    np.testing.assert_allclose(np.asarray(out), np.asarray(ref),
                               atol=1e-4, rtol=1e-4)
    print("KERNEL_OK")
</pallas_src>

<mosaic_0001>
module attributes {stable_mosaic.version = 11 : i64} {
  func.func @_warp_kernel(%arg0: i32, %arg1: memref<1x64x16xf32, #tpu.memory_space<vmem>>, %arg2: memref<1x2x256xf32, #tpu.memory_space<vmem>>, %arg3: memref<1x4x256xf32, #tpu.memory_space<vmem>>) attributes {dimension_semantics = [#tpu.dimension_semantics<parallel>], iteration_bounds = array<i64: 2>, scalar_prefetch = 0 : i64, scratch_operands = 0 : i64, tpu.core_type = #tpu.core_type<tc>, window_params = [{transform_indices = @transform_0, window_bounds = array<i64: 1, 64, 16>}, {transform_indices = @transform_1, window_bounds = array<i64: 1, 2, 256>}, {transform_indices = @transform_2, window_bounds = array<i64: 1, 4, 256>}]} {
    %c0 = arith.constant 0 : index
    %c0_0 = arith.constant 0 : index
    %c0_1 = arith.constant 0 : index
    %0 = vector.load %arg2[%c0, %c0_0, %c0_1] : memref<1x2x256xf32, #tpu.memory_space<vmem>>, vector<1x2x256xf32>
    %1 = vector.extract_strided_slice %0 {offsets = [0, 0, 0], sizes = [1, 1, 256], strides = [1, 1, 1]} : vector<1x2x256xf32> to vector<1x1x256xf32>
    %2 = vector.extract_strided_slice %0 {offsets = [0, 1, 0], sizes = [1, 1, 256], strides = [1, 1, 1]} : vector<1x2x256xf32> to vector<1x1x256xf32>
    %3 = math.floor %1 : vector<1x1x256xf32>
    %4 = math.floor %2 : vector<1x1x256xf32>
    %5 = arith.subf %1, %3 : vector<1x1x256xf32>
    %6 = arith.subf %2, %4 : vector<1x1x256xf32>
    %7 = arith.fptosi %3 : vector<1x1x256xf32> to vector<1x1x256xi32>
    %8 = arith.fptosi %4 : vector<1x1x256xf32> to vector<1x1x256xi32>
    %c1_i32 = arith.constant 1 : i32
    %9 = vector.broadcast %c1_i32 : i32 to vector<1x1x256xi32>
    %10 = arith.addi %7, %9 : vector<1x1x256xi32>
    %c1_i32_2 = arith.constant 1 : i32
    %11 = vector.broadcast %c1_i32_2 : i32 to vector<1x1x256xi32>
    %12 = arith.addi %8, %11 : vector<1x1x256xi32>
    %c0_i32 = arith.constant 0 : i32
    %13 = vector.broadcast %c0_i32 : i32 to vector<1x1x256xi32>
    %14 = arith.cmpi sge, %7, %13 : vector<1x1x256xi32>
    %c16_i32 = arith.constant 16 : i32
    %15 = vector.broadcast %c16_i32 : i32 to vector<1x1x256xi32>
    %16 = arith.cmpi slt, %7, %15 : vector<1x1x256xi32>
    %17 = arith.andi %14, %16 : vector<1x1x256xi1>
    %cst = arith.constant 1.000000e+00 : f32
    %18 = vector.broadcast %cst : f32 to vector<1x1x256xf32>
    %19 = arith.subf %18, %5 : vector<1x1x256xf32>
    %cst_3 = arith.constant 0.000000e+00 : f32
    %20 = vector.broadcast %cst_3 : f32 to vector<1x1x256xf32>
    %21 = arith.select %17, %19, %20 : vector<1x1x256xi1>, vector<1x1x256xf32>
    %c0_i32_4 = arith.constant 0 : i32
    %22 = vector.broadcast %c0_i32_4 : i32 to vector<1x1x256xi32>
    %23 = arith.cmpi sge, %10, %22 : vector<1x1x256xi32>
    %c16_i32_5 = arith.constant 16 : i32
    %24 = vector.broadcast %c16_i32_5 : i32 to vector<1x1x256xi32>
    %25 = arith.cmpi slt, %10, %24 : vector<1x1x256xi32>
    %26 = arith.andi %23, %25 : vector<1x1x256xi1>
    %cst_6 = arith.constant 0.000000e+00 : f32
    %27 = vector.broadcast %cst_6 : f32 to vector<1x1x256xf32>
    %28 = arith.select %26, %5, %27 : vector<1x1x256xi1>, vector<1x1x256xf32>
    %c0_i32_7 = arith.constant 0 : i32
    %29 = vector.broadcast %c0_i32_7 : i32 to vector<1x1x256xi32>
    %30 = arith.cmpi sge, %8, %29 : vector<1x1x256xi32>
    %c16_i32_8 = arith.constant 16 : i32
    %31 = vector.broadcast %c16_i32_8 : i32 to vector<1x1x256xi32>
    %32 = arith.cmpi slt, %8, %31 : vector<1x1x256xi32>
    %33 = arith.andi %30, %32 : vector<1x1x256xi1>
    %cst_9 = arith.constant 1.000000e+00 : f32
    %34 = vector.broadcast %cst_9 : f32 to vector<1x1x256xf32>
    %35 = arith.subf %34, %6 : vector<1x1x256xf32>
    %cst_10 = arith.constant 0.000000e+00 : f32
    %36 = vector.broadcast %cst_10 : f32 to vector<1x1x256xf32>
    %37 = arith.select %33, %35, %36 : vector<1x1x256xi1>, vector<1x1x256xf32>
    %c0_i32_11 = arith.constant 0 : i32
    %38 = vector.broadcast %c0_i32_11 : i32 to vector<1x1x256xi32>
    %39 = arith.cmpi sge, %12, %38 : vector<1x1x256xi32>
    %c16_i32_12 = arith.constant 16 : i32
    %40 = vector.broadcast %c16_i32_12 : i32 to vector<1x1x256xi32>
    %41 = arith.cmpi slt, %12, %40 : vector<1x1x256xi32>
    %42 = arith.andi %39, %41 : vector<1x1x256xi1>
    %cst_13 = arith.constant 0.000000e+00 : f32
    %43 = vector.broadcast %cst_13 : f32 to vector<1x1x256xf32>
    %44 = arith.select %42, %6, %43 : vector<1x1x256xi1>, vector<1x1x256xf32>
    %45 = tpu.iota {dimensions = array<i32: 1>} : vector<1x16x256xi32>
    %46 = tpu.iota {dimensions = array<i32: 1>} : vector<1x16x256xi32>
    %47 = vector.broadcast %7 : vector<1x1x256xi32> to vector<1x16x256xi32>
    %48 = arith.cmpi eq, %45, %47 : vector<1x16x256xi32>
    %cst_14 = arith.constant 0.000000e+00 : f32
    %49 = vector.shape_cast %21 : vector<1x1x256xf32> to vector<1x1x256xf32>
    %50 = vector.broadcast %49 : vector<1x1x256xf32> to vector<1x16x256xf32>
    %51 = vector.broadcast %cst_14 : f32 to vector<1x16x256xf32>
    %52 = arith.select %48, %50, %51 : vector<1x16x256xi1>, vector<1x16x256xf32>
    %53 = vector.broadcast %10 : vector<1x1x256xi32> to vector<1x16x256xi32>
    %54 = arith.cmpi eq, %45, %53 : vector<1x16x256xi32>
    %cst_15 = arith.constant 0.000000e+00 : f32
    %55 = vector.shape_cast %28 : vector<1x1x256xf32> to vector<1x1x256xf32>
    %56 = vector.broadcast %55 : vector<1x1x256xf32> to vector<1x16x256xf32>
    %57 = vector.broadcast %cst_15 : f32 to vector<1x16x256xf32>
    %58 = arith.select %54, %56, %57 : vector<1x16x256xi1>, vector<1x16x256xf32>
    %59 = arith.addf %52, %58 : vector<1x16x256xf32>
    %60 = vector.broadcast %8 : vector<1x1x256xi32> to vector<1x16x256xi32>
    %61 = arith.cmpi eq, %46, %60 : vector<1x16x256xi32>
    %cst_16 = arith.constant 0.000000e+00 : f32
    %62 = vector.shape_cast %37 : vector<1x1x256xf32> to vector<1x1x256xf32>
    %63 = vector.broadcast %62 : vector<1x1x256xf32> to vector<1x16x256xf32>
    %64 = vector.broadcast %cst_16 : f32 to vector<1x16x256xf32>
    %65 = arith.select %61, %63, %64 : vector<1x16x256xi1>, vector<1x16x256xf32>
    %66 = vector.broadcast %12 : vector<1x1x256xi32> to vector<1x16x256xi32>
    %67 = arith.cmpi eq, %46, %66 : vector<1x16x256xi32>
    %cst_17 = arith.constant 0.000000e+00 : f32
    %68 = vector.shape_cast %44 : vector<1x1x256xf32> to vector<1x1x256xf32>
    %69 = vector.broadcast %68 : vector<1x1x256xf32> to vector<1x16x256xf32>
    %70 = vector.broadcast %cst_17 : f32 to vector<1x16x256xf32>
    %71 = arith.select %67, %69, %70 : vector<1x16x256xi1>, vector<1x16x256xf32>
    %72 = arith.addf %65, %71 : vector<1x16x256xf32>
    %c0_18 = arith.constant 0 : index
    %c0_19 = arith.constant 0 : index
    %c0_20 = arith.constant 0 : index
    %73 = vector.load %arg1[%c0_18, %c0_19, %c0_20] : memref<1x64x16xf32, #tpu.memory_space<vmem>>, vector<1x64x16xf32>
    "tpu.trace_start"() <{level = 10 : i32, message = "bmw,bwp->bmp"}> : () -> ()
    %cst_21 = arith.constant dense<0.000000e+00> : vector<1x64x256xf32>
    %74 = tpu.matmul %73, %72, %cst_21 {dimension_numbers = #tpu.dot_dimension_numbers<[2], [1], [1], [2], [0, 0, 0, 1, 1, 2], [0], [0]>} : vector<1x64x16xf32>, vector<1x16x256xf32>, vector<1x64x256xf32> -> vector<1x64x256xf32>
    "tpu.trace_stop"() : () -> ()
    %75 = vector.extract_strided_slice %74 {offsets = [0, 0, 0], sizes = [1, 16, 256], strides = [1, 1, 1]} : vector<1x64x256xf32> to vector<1x16x256xf32>
    %76 = arith.mulf %75, %59 : vector<1x16x256xf32>
    %cst_22 = arith.constant dense<0.000000e+00> : vector<1x256xf32>
    %77 = vector.multi_reduction <add>, %76, %cst_22 [1] : vector<1x16x256xf32> to vector<1x256xf32>
    %78 = vector.shape_cast %77 : vector<1x256xf32> to vector<1x1x256xf32>
    %c0_23 = arith.constant 0 : index
    %c0_24 = arith.constant 0 : index
    %c0_25 = arith.constant 0 : index
    %79 = vector.load %arg3[%c0_23, %c0_24, %c0_25] : memref<1x4x256xf32, #tpu.memory_space<vmem>>, vector<1x1x256xf32>
    tpu.vector_store %arg3[%c0_23, %c0_24, %c0_25], %78 {strides = array<i32>} : memref<1x4x256xf32, #tpu.memory_space<vmem>>, vector<1x1x256xf32>,
    %80 = vector.extract_strided_slice %74 {offsets = [0, 16, 0], sizes = [1, 16, 256], strides = [1, 1, 1]} : vector<1x64x256xf32> to vector<1x16x256xf32>
    %81 = arith.mulf %80, %59 : vector<1x16x256xf32>
    %cst_26 = arith.constant dense<0.000000e+00> : vector<1x256xf32>
    %82 = vector.multi_reduction <add>, %81, %cst_26 [1] : vector<1x16x256xf32> to vector<1x256xf32>
    %83 = vector.shape_cast %82 : vector<1x256xf32> to vector<1x1x256xf32>
    %c0_27 = arith.constant 0 : index
    %c1 = arith.constant 1 : index
    %c0_28 = arith.constant 0 : index
    %84 = vector.load %arg3[%c0_27, %c1, %c0_28] : memref<1x4x256xf32, #tpu.memory_space<vmem>>, vector<1x1x256xf32>
    tpu.vector_store %arg3[%c0_27, %c1, %c0_28], %83 {strides = array<i32>} : memref<1x4x256xf32, #tpu.memory_space<vmem>>, vector<1x1x256xf32>,
    %85 = vector.extract_strided_slice %74 {offsets = [0, 32, 0], sizes = [1, 16, 256], strides = [1, 1, 1]} : vector<1x64x256xf32> to vector<1x16x256xf32>
    %86 = arith.mulf %85, %59 : vector<1x16x256xf32>
    %cst_29 = arith.constant dense<0.000000e+00> : vector<1x256xf32>
    %87 = vector.multi_reduction <add>, %86, %cst_29 [1] : vector<1x16x256xf32> to vector<1x256xf32>
    %88 = vector.shape_cast %87 : vector<1x256xf32> to vector<1x1x256xf32>
    %c0_30 = arith.constant 0 : index
    %c2 = arith.constant 2 : index
    %c0_31 = arith.constant 0 : index
    %89 = vector.load %arg3[%c0_30, %c2, %c0_31] : memref<1x4x256xf32, #tpu.memory_space<vmem>>, vector<1x1x256xf32>
    tpu.vector_store %arg3[%c0_30, %c2, %c0_31], %88 {strides = array<i32>} : memref<1x4x256xf32, #tpu.memory_space<vmem>>, vector<1x1x256xf32>,
    %90 = vector.extract_strided_slice %74 {offsets = [0, 48, 0], sizes = [1, 16, 256], strides = [1, 1, 1]} : vector<1x64x256xf32> to vector<1x16x256xf32>
    %91 = arith.mulf %90, %59 : vector<1x16x256xf32>
    %cst_32 = arith.constant dense<0.000000e+00> : vector<1x256xf32>
    %92 = vector.multi_reduction <add>, %91, %cst_32 [1] : vector<1x16x256xf32> to vector<1x256xf32>
    %93 = vector.shape_cast %92 : vector<1x256xf32> to vector<1x1x256xf32>
    %c0_33 = arith.constant 0 : index
    %c3 = arith.constant 3 : index
    %c0_34 = arith.constant 0 : index
    %94 = vector.load %arg3[%c0_33, %c3, %c0_34] : memref<1x4x256xf32, #tpu.memory_space<vmem>>, vector<1x1x256xf32>
    tpu.vector_store %arg3[%c0_33, %c3, %c0_34], %93 {strides = array<i32>} : memref<1x4x256xf32, #tpu.memory_space<vmem>>, vector<1x1x256xf32>,
    return
  }
  func.func @transform_0(%arg0: i32) -> (i32, i32, i32) {
    %c0_i32 = arith.constant 0 : i32
    %c0_i32_0 = arith.constant 0 : i32
    %c0_i32_1 = arith.constant 0 : i32
    return %arg0, %c0_i32, %c0_i32_0 : i32, i32, i32
  }
  func.func @transform_1(%arg0: i32) -> (i32, i32, i32) {
    %c0_i32 = arith.constant 0 : i32
    %c0_i32_0 = arith.constant 0 : i32
    %c0_i32_1 = arith.constant 0 : i32
    return %arg0, %c0_i32, %c0_i32_0 : i32, i32, i32
  }
  func.func @transform_2(%arg0: i32) -> (i32, i32, i32) {
    %c0_i32 = arith.constant 0 : i32
    %c0_i32_0 = arith.constant 0 : i32
    %c0_i32_1 = arith.constant 0 : i32
    return %arg0, %c0_i32, %c0_i32_0 : i32, i32, i32
  }
}

</mosaic_0001>

<llo_original>
// kernel: tpu_custom_call.1
$region0: #{tpu_custom_call.1}
  #allocation0 [shape = 'u32[]', space=smem, size = 0x4, offset = 0x4, fixed_abs, tag = 'smem constant byte address 0x4 - core index']
  #allocation1 [shape = 'u32[144,128]{1,0:T(1,128)}', space=vmem, size = 0x12000, scoped, tag = 'internal scratch']
  %s0 = inlined_call_operand.vmem [shape: f32[2,64,16], index: 0, kind: input, shape index: {}]
  %s1 = inlined_call_operand.vmem [shape: f32[2,2,256], index: 1, kind: input, shape index: {}]
  %s2 = inlined_call_operand.hbm [shape: f32[2,4,256], index: 2, kind: output, shape index: {}]
  %s3 = sld [smem:[#allocation0]]
  $region41: #{tpu_custom_call.1} parent=0
    _
  %s5 = ssub.s32 1, %s3
  %s6 = scalar_select 0, %s5, %s3
  $region1: #{tpu_custom_call.1} parent=0
    #allocation2 [shape = 'u8[8192]{0}', space=vmem, size = 0x2000, scoped, tag = 'output window, operand 0']
    #allocation3 [shape = 's32[2]{0}', space=sflag, size = 0x8, scoped, tag = 'scoped memory for tpu_custom_call.1']
    %7 = vsyncpa [#allocation3], 0
    %s8 = scalar_lea.sflag [#allocation3], 1
    %9 = vsyncpa %s8, 0
    loop: start=0, step=1, limit=4
    $region2: #{tpu_custom_call.1} parent=1 // loop_pre_header
      _
    $region3: #{tpu_custom_call.1} parent=1 // loop_header
      %s11 = sphi 0, %s15
      %p12 = scmp.ge.s32.totalorder %s11, 4
      %s21 = sphi 0, %s23
      %s24 = sphi 0, %s21
      %s25 = sphi 0, %s24
      %s41 = sphi 0, %s25
      %s47 = sphi 0, %s49
      %s50 = sphi 0, %s47
      %s51 = sphi 0, %s50
      %s67 = sphi 0, %s51
      %s73 = sphi 0, %s75
      %s76 = sphi 0, %s73
      %s77 = sphi 0, %s76
      %s93 = sphi 0, %s77
    $region4: #{tpu_custom_call.1} parent=1 // loop_header_branch
      %14 = sbr.rel (%p12) target = $region8
    $region5: #{tpu_custom_call.1} parent=1 // loop_body
      %s16 = ssub.s32 %s11, 1
      %s17 = ssub.s32 %s11, 2
      %s18 = sadd.s32 %s11, 1
      %s19 = ssub.s32 %s11, %s18
      %p20 = scmp.eq.s32.totalorder %s19, 0
      %s22 = sadd.s32 %s21, 1
      %s23 = scalar_select %p20, %s21, %s22
      %p26 = pneg %p20
      %p27 = scmp.eq.s32.totalorder %s11, 1
      %p28 = por %p26, %p27
      %p29 = scmp.ne.s32.totalorder %s21, %s24
      %p30 = scmp.eq.s32.totalorder %s11, 0
      %p31 = por %p29, %p30
      %p32 = scmp.ne.s32.totalorder %s21, %s24
      %p33 = scmp.eq.s32.totalorder %s16, 1
      %p34 = por %p32, %p33
      %p35 = scmp.ne.s32.totalorder %s24, %s25
      %p36 = scmp.eq.s32.totalorder %s16, 0
      %p37 = por %p35, %p36
      %p38 = scmp.ne.s32.totalorder %s24, %s25
      %p39 = scmp.eq.s32.totalorder %s17, 1
      %p40 = por %p38, %p39
      %p42 = scmp.ne.s32.totalorder %s25, %s41
      %p43 = scmp.eq.s32.totalorder %s17, 0
      %p44 = por %p42, %p43
      %s45 = ssub.s32 %s11, %s18
      %p46 = scmp.eq.s32.totalorder %s45, 0
      %s48 = sadd.s32 %s47, 1
      %s49 = scalar_select %p46, %s47, %s48
      %p52 = pneg %p46
      %p53 = scmp.eq.s32.totalorder %s11, 1
      %p54 = por %p52, %p53
      %p55 = scmp.ne.s32.totalorder %s47, %s50
      %p56 = scmp.eq.s32.totalorder %s11, 0
      %p57 = por %p55, %p56
      %p58 = scmp.ne.s32.totalorder %s47, %s50
      %p59 = scmp.eq.s32.totalorder %s16, 1
      %p60 = por %p58, %p59
      %p61 = scmp.ne.s32.totalorder %s50, %s51
      %p62 = scmp.eq.s32.totalorder %s16, 0
      %p63 = por %p61, %p62
      %p64 = scmp.ne.s32.totalorder %s50, %s51
      %p65 = scmp.eq.s32.totalorder %s17, 1
      %p66 = por %p64, %p65
      %p68 = scmp.ne.s32.totalorder %s51, %s67
      %p69 = scmp.eq.s32.totalorder %s17, 0
      %p70 = por %p68, %p69
      %s71 = ssub.s32 %s11, %s18
      %p72 = scmp.eq.s32.totalorder %s71, 0
      %s74 = sadd.s32 %s73, 1
      %s75 = scalar_select %p72, %s73, %s74
      %p78 = pneg %p72
      %p79 = scmp.eq.s32.totalorder %s11, 1
      %p80 = por %p78, %p79
      %p81 = scmp.ne.s32.totalorder %s73, %s76
      %p82 = scmp.eq.s32.totalorder %s11, 0
      %p83 = por %p81, %p82
      %p84 = scmp.ne.s32.totalorder %s73, %s76
      %p85 = scmp.eq.s32.totalorder %s16, 1
      %p86 = por %p84, %p85
      %p87 = scmp.ne.s32.totalorder %s76, %s77
      %p88 = scmp.eq.s32.totalorder %s16, 0
      %p89 = por %p87, %p88
      %p90 = scmp.ne.s32.totalorder %s76, %s77
      %p91 = scmp.eq.s32.totalorder %s17, 1
      %p92 = por %p90, %p91
      %p94 = scmp.ne.s32.totalorder %s77, %s93
      %p95 = scmp.eq.s32.totalorder %s17, 0
      %p96 = por %p94, %p95
      %p97 = scmp.le.s32.totalorder 1, %s11
      %p98 = scmp.lt.s32.totalorder %s11, 3
      %p99 = pnand %p97, %p98
      %p100 = pneg %p99
      // Predicated region
      $region9: #{tpu_custom_call.1} parent=5 // pred_check
        _
      $region10: #{tpu_custom_call.1} parent=5 // pred_check_branch
        %102 = sbr.rel (%p99) target = $region12
      $region11: #{tpu_custom_call.1} parent=5 // pred_region
        %s103 = ssub.s32 %s11, 1
      $region12: #{tpu_custom_call.1} parent=5 // pred_fallthru
        _
      %p104 = scmp.lt.s32.totalorder %s11, 2
      // Predicated region
      $region13: #{tpu_custom_call.1} parent=5 // pred_check
        %p105 = pneg %p104
      $region14: #{tpu_custom_call.1} parent=5 // pred_check_branch
        %107 = sbr.rel (%p105) target = $region16
      $region15: #{tpu_custom_call.1} parent=5 // pred_region
        // Predicated region
        $region17: #{tpu_custom_call.1} parent=15 // pred_check
          %p108 = pneg %p31
        $region18: #{tpu_custom_call.1} parent=15 // pred_check_branch
          %110 = sbr.rel (%p108) target = $region20
        $region19: #{tpu_custom_call.1} parent=15 // pred_region
          %p111 = scmp.lt.s32.totalorder %s11, 1
          %s112 = scalar_select %p111, %s11, 1
          %s113 = smul.addr %s112, 8
          %s114 = smul.addr %s113, 8
          %s115 = scalar_lea.vmem %s0, %s114
        $region20: #{tpu_custom_call.1} parent=15 // pred_fallthru
          _
        // Predicated region
        $region21: #{tpu_custom_call.1} parent=15 // pred_check
          %p116 = pneg %p57
        $region22: #{tpu_custom_call.1} parent=15 // pred_check_branch
          %118 = sbr.rel (%p116) target = $region24
        $region23: #{tpu_custom_call.1} parent=15 // pred_region
          %p119 = scmp.lt.s32.totalorder %s11, 1
          %s120 = scalar_select %p119, %s11, 1
          %s121 = smul.addr %s120, 2
          %s122 = smul.addr %s121, 2
          %s123 = scalar_lea.vmem %s1, %s122
        $region24: #{tpu_custom_call.1} parent=15 // pred_fallthru
          _
      $region16: #{tpu_custom_call.1} parent=5 // pred_fallthru
        _
      %p124 = scmp.le.s32.totalorder 1, %s11
      %p125 = scmp.lt.s32.totalorder %s11, 3
      %p126 = pnand %p124, %p125
      %p127 = pneg %p126
      // Predicated region
      $region25: #{tpu_custom_call.1} parent=5 // pred_check
        _
      $region26: #{tpu_custom_call.1} parent=5 // pred_check_branch
        %129 = sbr.rel (%p126) target = $region28
      $region27: #{tpu_custom_call.1} parent=5 // pred_region
        %s130 = ssub.s32 %s11, 1
        %p131 = scmp.lt.s32.totalorder %s16, 1
        %s132 = scalar_select %p131, %s16, 1
        %s133 = smul.addr %s132, 8
        %s134 = smul.addr %s133, 8
        %s135 = scalar_lea.vmem %s0, %s134
        %p136 = pneg %p37
        %p137 = pneg %p34
        %p138 = scmp.lt.s32.totalorder %s16, 1
        %s139 = scalar_select %p138, %s16, 1
        %s140 = smul.addr %s139, 2
        %s141 = smul.addr %s140, 2
        %s142 = scalar_lea.vmem %s1, %s141
        %p143 = pneg %p63
        %p144 = pneg %p60
        %p145 = pneg %p89
        %p146 = pneg %p86
        %s147 = sand.u32 %s76, 1
        %s148 = scalar_lea.sflag [#allocation3], %s147
        %s149 = sand.u32 %s76, 1
        %s150 = smul.addr %s149, 8
        %s151 = scalar_lea.vmem [#allocation2], %s150
        %p152 = scmp.lt.s32.totalorder %s16, 1
        %s153 = scalar_select %p152, %s16, 1
        %s154 = smul.addr %s153, 8
        %s155 = smul.addr %s154, 8
        %s156 = scalar_lea.vmem %s0, %s155
        %p157 = scmp.lt.s32.totalorder %s16, 1
        %s158 = scalar_select %p157, %s16, 1
        %s159 = smul.addr %s158, 2
        %s160 = smul.addr %s159, 2
        %s161 = scalar_lea.vmem %s1, %s160
        %v162 = vld [vmem:[%s161] sm:$0xf]
        %v163 = vfloor.f32 %v162
        %v164 = vsub.f32 %v162, %v163
        %v165 = vcvt.f32.s32.to.zero.pseudo %v163
        %v166 = vadd.s32 %v165, 1
        %vm167 = vcmp.ge.s32.totalorder %v165, 0
        %vm168 = vcmp.lt.s32.totalorder %v165, 16
        %vm169 = vmand %vm167, %vm168
        %v170 = vsub.f32 1.0, %v164
        %v171 = vsel %vm169, %v170, 0.0
        %vm172 = vcmp.ge.s32.totalorder %v166, 0
        %vm173 = vcmp.lt.s32.totalorder %v166, 16
        %vm174 = vmand %vm172, %vm173
        %v175 = vsel %vm174, %v164, 0.0
        %v176 = vlaneseq
        %v177 = vshrl.u32 %v176, 7
        %v178 = vadd.s32 %v177, 8
        %v179 = vlaneseq
        %v180 = vshrl.u32 %v179, 7
        %v181 = vsub.s32 0, %v180
        %v182 = vrot.slane %v165, %v181
        %v183 = vlaneseq
        %v184 = vshrl.u32 %v183, 7
        %v185 = vsub.s32 2, %v184
        %v186 = vrot.slane %v165, %v185
        %v187 = vlaneseq
        %v188 = vshrl.u32 %v187, 7
        %v189 = vsub.s32 0, %v188
        %v190 = vrot.slane %v182, %v189
        %v191 = vlaneseq
        %v192 = vshrl.u32 %v191, 7
        %v193 = vsub.s32 0, %v192
        %v194 = vrot.slane %v186, %v193
        %vm195 = vcmp.eq.s32.totalorder %v177, %v190
        %vm196 = vcmp.eq.s32.totalorder %v177, %v194
        %vm197 = vcmp.eq.s32.totalorder %v178, %v190
        %vm198 = vcmp.eq.s32.totalorder %v178, %v194
        %v200 = vlaneseq
        %v201 = vshrl.u32 %v200, 7
        %v202 = vsub.s32 0, %v201
        %v203 = vrot.slane %v171, %v202
        %v204 = vlaneseq
        %v205 = vshrl.u32 %v204, 7
        %v206 = vsub.s32 2, %v205
        %v207 = vrot.slane %v171, %v206
        %v210 = vlaneseq
        %v211 = vshrl.u32 %v210, 7
        %v212 = vsub.s32 0, %v211
        %v213 = vrot.slane %v203, %v212
        %v214 = vlaneseq
        %v215 = vshrl.u32 %v214, 7
        %v216 = vsub.s32 0, %v215
        %v217 = vrot.slane %v207, %v216
        %v218 = vsel %vm195, %v213, 0.0
        %v219 = vsel %vm196, %v217, 0.0
        %v220 = vsel %vm197, %v213, 0.0
        %v221 = vsel %vm198, %v217, 0.0
        %v222 = vlaneseq
        %v223 = vshrl.u32 %v222, 7
        %v224 = vsub.s32 0, %v223
        %v225 = vrot.slane %v166, %v224
        %v226 = vlaneseq
        %v227 = vshrl.u32 %v226, 7
        %v228 = vsub.s32 2, %v227
        %v229 = vrot.slane %v166, %v228
        %v230 = vlaneseq
        %v231 = vshrl.u32 %v230, 7
        %v232 = vsub.s32 0, %v231
        %v233 = vrot.slane %v225, %v232
        %v234 = vlaneseq
        %v235 = vshrl.u32 %v234, 7
        %v236 = vsub.s32 0, %v235
        %v237 = vrot.slane %v229, %v236
        %vm238 = vcmp.eq.s32.totalorder %v177, %v233
        %vm239 = vcmp.eq.s32.totalorder %v177, %v237
        %vm240 = vcmp.eq.s32.totalorder %v178, %v233
        %vm241 = vcmp.eq.s32.totalorder %v178, %v237
        %v243 = vlaneseq
        %v244 = vshrl.u32 %v243, 7
        %v245 = vsub.s32 0, %v244
        %v246 = vrot.slane %v175, %v245
        %v247 = vlaneseq
        %v248 = vshrl.u32 %v247, 7
        %v249 = vsub.s32 2, %v248
        %v250 = vrot.slane %v175, %v249
        %v253 = vlaneseq
        %v254 = vshrl.u32 %v253, 7
        %v255 = vsub.s32 0, %v254
        %v256 = vrot.slane %v246, %v255
        %v257 = vlaneseq
        %v258 = vshrl.u32 %v257, 7
        %v259 = vsub.s32 0, %v258
        %v260 = vrot.slane %v250, %v259
        %v261 = vsel %vm238, %v256, 0.0
        %v262 = vsel %vm239, %v260, 0.0
        %v263 = vsel %vm240, %v256, 0.0
        %v264 = vsel %vm241, %v260, 0.0
        %v265 = vadd.f32 %v218, %v261
        %v266 = vadd.f32 %v219, %v262
        %v267 = vadd.f32 %v220, %v263
        %v268 = vadd.f32 %v221, %v264
        %v269 = vlaneseq
        %v270 = vshrl.u32 %v269, 7
        %v271 = vsub.s32 1, %v270
        %v272 = vrot.slane %v165, %v271
        %v273 = vlaneseq
        %v274 = vshrl.u32 %v273, 7
        %v275 = vsub.s32 3, %v274
        %v276 = vrot.slane %v165, %v275
        %v277 = vlaneseq
        %v278 = vshrl.u32 %v277, 7
        %v279 = vsub.s32 1, %v278
        %v280 = vrot.slane %v272, %v279
        %v281 = vlaneseq
        %v282 = vshrl.u32 %v281, 7
        %v283 = vsub.s32 1, %v282
        %v284 = vrot.slane %v276, %v283
        %vm285 = vcmp.eq.s32.totalorder %v177, %v280
        %vm286 = vcmp.eq.s32.totalorder %v177, %v284
        %vm287 = vcmp.eq.s32.totalorder %v178, %v280
        %vm288 = vcmp.eq.s32.totalorder %v178, %v284
        %v289 = vlaneseq
        %v290 = vshrl.u32 %v289, 7
        %v291 = vsub.s32 1, %v290
        %v292 = vrot.slane %v171, %v291
        %v293 = vlaneseq
        %v294 = vshrl.u32 %v293, 7
        %v295 = vsub.s32 3, %v294
        %v296 = vrot.slane %v171, %v295
        %v299 = vlaneseq
        %v300 = vshrl.u32 %v299, 7
        %v301 = vsub.s32 1, %v300
        %v302 = vrot.slane %v292, %v301
        %v303 = vlaneseq
        %v304 = vshrl.u32 %v303, 7
        %v305 = vsub.s32 1, %v304
        %v306 = vrot.slane %v296, %v305
        %v307 = vsel %vm285, %v302, 0.0
        %v308 = vsel %vm286, %v306, 0.0
        %v309 = vsel %vm287, %v302, 0.0
        %v310 = vsel %vm288, %v306, 0.0
        %v311 = vlaneseq
        %v312 = vshrl.u32 %v311, 7
        %v313 = vsub.s32 1, %v312
        %v314 = vrot.slane %v166, %v313
        %v315 = vlaneseq
        %v316 = vshrl.u32 %v315, 7
        %v317 = vsub.s32 3, %v316
        %v318 = vrot.slane %v166, %v317
        %v319 = vlaneseq
        %v320 = vshrl.u32 %v319, 7
        %v321 = vsub.s32 1, %v320
        %v322 = vrot.slane %v314, %v321
        %v323 = vlaneseq
        %v324 = vshrl.u32 %v323, 7
        %v325 = vsub.s32 1, %v324
        %v326 = vrot.slane %v318, %v325
        %vm327 = vcmp.eq.s32.totalorder %v177, %v322
        %vm328 = vcmp.eq.s32.totalorder %v177, %v326
        %vm329 = vcmp.eq.s32.totalorder %v178, %v322
        %vm330 = vcmp.eq.s32.totalorder %v178, %v326
        %v331 = vlaneseq
        %v332 = vshrl.u32 %v331, 7
        %v333 = vsub.s32 1, %v332
        %v334 = vrot.slane %v175, %v333
        %v335 = vlaneseq
        %v336 = vshrl.u32 %v335, 7
        %v337 = vsub.s32 3, %v336
        %v338 = vrot.slane %v175, %v337
        %v341 = vlaneseq
        %v342 = vshrl.u32 %v341, 7
        %v343 = vsub.s32 1, %v342
        %v344 = vrot.slane %v334, %v343
        %v345 = vlaneseq
        %v346 = vshrl.u32 %v345, 7
        %v347 = vsub.s32 1, %v346
        %v348 = vrot.slane %v338, %v347
        %v349 = vsel %vm327, %v344, 0.0
        %v350 = vsel %vm328, %v348, 0.0
        %v351 = vsel %vm329, %v344, 0.0
        %v352 = vsel %vm330, %v348, 0.0
        %v353 = vadd.f32 %v307, %v349
        %v354 = vadd.f32 %v308, %v350
        %v355 = vadd.f32 %v309, %v351
        %v356 = vadd.f32 %v310, %v352
        %v357 = vld [vmem:[%s156] sm:$0xff]
        %v358 = vld [vmem:[%s156 + $0x8] sm:$0xff]
        %v359 = vld [vmem:[%s156 + $0x10] sm:$0xff]
        %v360 = vld [vmem:[%s156 + $0x18] sm:$0xff]
        %v361 = vld [vmem:[%s156 + $0x20] sm:$0xff]
        %v362 = vld [vmem:[%s156 + $0x28] sm:$0xff]
        %v363 = vld [vmem:[%s156 + $0x30] sm:$0xff]
        %v364 = vld [vmem:[%s156 + $0x38] sm:$0xff]
        %vm365 = vcmask 130048
        %v367 = vsel %vm365, %v357, 0
        %v370 = vsel %vm365, %v358, 0
        %v373 = vsel %vm365, %v359, 0
        %v376 = vsel %vm365, %v360, 0
        %v379 = vsel %vm365, %v361, 0
        %v382 = vsel %vm365, %v362, 0
        %v385 = vsel %vm365, %v363, 0
        %v388 = vsel %vm365, %v364, 0
        %390 = vmatprep.subr.mxu0 %v354
        %391 = vmatpush1.msra.mxu0 %v353
        %392 = vmatprep.subr.mxu0 %v356
        %393 = vmatpush1.msra.mxu0 %v355
        %394 = vmatprep.subr.mxu0 0.0
        %395 = vmatpush1.msra.mxu0 0.0
        %396 = vmatprep.subr.mxu0 0.0
        %397 = vmatpush1.msra.mxu0 0.0
        %398 = vmatprep.subr.mxu0 0.0
        %399 = vmatpush1.msra.mxu0 0.0
        %400 = vmatprep.subr.mxu0 0.0
        %401 = vmatpush1.msra.mxu0 0.0
        %402 = vmatprep.subr.mxu0 0.0
        %403 = vmatpush1.msra.mxu0 0.0
        %404 = vmatprep.subr.mxu0 0.0
        %405 = vmatpush1.msra.mxu0 0.0
        %406 = vmatprep.subr.mxu0 0.0
        %407 = vmatpush1.msra.mxu0 0.0
        %408 = vmatprep.subr.mxu0 0.0
        %409 = vmatpush1.msra.mxu0 0.0
        %410 = vmatprep.subr.mxu0 0.0
        %411 = vmatpush1.msra.mxu0 0.0
        %412 = vmatprep.subr.mxu0 0.0
        %413 = vmatpush1.msra.mxu0 0.0
        %414 = vmatprep.subr.mxu0 0.0
        %415 = vmatpush1.msra.mxu0 0.0
        %416 = vmatprep.subr.mxu0 0.0
        %417 = vmatpush1.msra.mxu0 0.0
        %418 = vmatprep.subr.mxu0 0.0
        %419 = vmatpush1.msra.mxu0 0.0
        %420 = vmatprep.subr.mxu0 0.0
        %421 = vmatpush1.msra.mxu0 0.0
        %422 = vmatprep.subr.mxu0 0.0
        %423 = vmatpush1.msra.mxu0 0.0
        %424 = vmatprep.subr.mxu0 0.0
        %425 = vmatpush1.msra.mxu0 0.0
        %426 = vmatprep.subr.mxu0 0.0
        %427 = vmatpush1.msra.mxu0 0.0
        %428 = vmatprep.subr.mxu0 0.0
        %429 = vmatpush1.msra.mxu0 0.0
        %430 = vmatprep.subr.mxu0 0.0
        %431 = vmatpush1.msra.mxu0 0.0
        %432 = vmatprep.subr.mxu0 0.0
        %433 = vmatpush1.msra.mxu0 0.0
        %434 = vmatprep.subr.mxu0 0.0
        %435 = vmatpush1.msra.mxu0 0.0
        %436 = vmatprep.subr.mxu0 0.0
        %437 = vmatpush1.msra.mxu0 0.0
        %438 = vmatprep.subr.mxu0 0.0
        %439 = vmatpush1.msra.mxu0 0.0
        %440 = vmatprep.subr.mxu0 0.0
        %441 = vmatpush1.msra.mxu0 0.0
        %442 = vmatprep.subr.mxu0 0.0
        %443 = vmatpush1.msra.mxu0 0.0
        %444 = vmatprep.subr.mxu0 0.0
        %445 = vmatpush1.msra.mxu0 0.0
        %446 = vmatprep.subr.mxu0 0.0
        %447 = vmatpush1.msra.mxu0 0.0
        %448 = vmatprep.subr.mxu0 0.0
        %449 = vmatpush1.msra.mxu0 0.0
        %450 = vmatprep.subr.mxu0 0.0
        %451 = vmatpush1.msra.mxu0 0.0
        %452 = vmatprep.subr.mxu0 0.0
        %453 = vmatpush1.msra.mxu0 0.0
        %454 = vmatprep.mubr.f32.mxu0 0.0
        %455 = vmatmul.mubr.f32.gmra.mrb[0].mxu0 %v367
        %v456 = vpop.f32.mrb[0].mxu0
        %v457 = vadd.f32 0.0, %v456
        %v458 = vpop.f32.mrb[0].mxu0
        %v459 = vadd.f32 0.0, %v458
        %460 = vmatprep.mubr.f32.mxu0 0.0
        %461 = vmatmul.mubr.f32.gmra.mrb[0].mxu0 %v370
        %v462 = vpop.f32.mrb[0].mxu0
        %v463 = vadd.f32 0.0, %v462
        %v464 = vpop.f32.mrb[0].mxu0
        %v465 = vadd.f32 0.0, %v464
        %466 = vmatprep.mubr.f32.mxu0 0.0
        %467 = vmatmul.mubr.f32.gmra.mrb[0].mxu0 %v373
        %v468 = vpop.f32.mrb[0].mxu0
        %v469 = vadd.f32 0.0, %v468
        %v470 = vpop.f32.mrb[0].mxu0
        %v471 = vadd.f32 0.0, %v470
        %472 = vmatprep.mubr.f32.mxu0 0.0
        %473 = vmatmul.mubr.f32.gmra.mrb[0].mxu0 %v376
        %v474 = vpop.f32.mrb[0].mxu0
        %v475 = vadd.f32 0.0, %v474
        %v476 = vpop.f32.mrb[0].mxu0
        %v477 = vadd.f32 0.0, %v476
        %478 = vmatprep.mubr.f32.mxu0 0.0
        %479 = vmatmul.mubr.f32.gmra.mrb[0].mxu0 %v379
        %v480 = vpop.f32.mrb[0].mxu0
        %v481 = vadd.f32 0.0, %v480
        %v482 = vpop.f32.mrb[0].mxu0
        %v483 = vadd.f32 0.0, %v482
        %484 = vmatprep.mubr.f32.mxu0 0.0
        %485 = vmatmul.mubr.f32.gmra.mrb[0].mxu0 %v382
        %v486 = vpop.f32.mrb[0].mxu0
        %v487 = vadd.f32 0.0, %v486
        %v488 = vpop.f32.mrb[0].mxu0
        %v489 = vadd.f32 0.0, %v488
        %490 = vmatprep.mubr.f32.mxu0 0.0
        %491 = vmatmul.mubr.f32.gmra.mrb[0].mxu0 %v385
        %v492 = vpop.f32.mrb[0].mxu0
        %v493 = vadd.f32 0.0, %v492
        %v494 = vpop.f32.mrb[0].mxu0
        %v495 = vadd.f32 0.0, %v494
        %496 = vmatprep.mubr.f32.mxu0 0.0
        %497 = vmatmul.mubr.f32.gmra.mrb[0].mxu0 %v388
        %v498 = vpop.f32.mrb[0].mxu0
        %v499 = vadd.f32 0.0, %v498
        %v500 = vpop.f32.mrb[0].mxu0
        %v501 = vadd.f32 0.0, %v500
        %502 = vdwg.mxu0
        %v503 = vmul.f32 %v457, %v265
        %v504 = vmul.f32 %v459, %v266
        %v505 = vmul.f32 %v463, %v267
        %v506 = vmul.f32 %v465, %v268
        %v507 = vadd.f32 %v503, %v505
        %v508 = vrot.slane %v507, 4
        %v509 = vadd.f32 %v507, %v508
        %v510 = vrot.slane %v509, 2
        %v511 = vadd.f32 %v509, %v510
        %v512 = vrot.slane %v511, 1
        %v513 = vadd.f32 %v511, %v512
        %v514 = vadd.f32 %v504, %v506
        %v515 = vrot.slane %v514, 4
        %v516 = vadd.f32 %v514, %v515
        %v517 = vrot.slane %v516, 2
        %v518 = vadd.f32 %v516, %v517
        %v519 = vrot.slane %v518, 1
        %v520 = vadd.f32 %v518, %v519
        %v523 = vcombine.low %v513, %v520
        %v525 = vunpack.c.l.s4 1966171168
        %v526 = vunpack.c.0.s8 %v525
        %v527 = vlaneseq
        %v528 = vshrl.u32 %v527, 7
        %v529 = vsub.s32 %v526, %v528
        %v530 = vrot.slane %v523, %v529
        %v532 = vunpack.c.l.s4 1966171168
        %v533 = vunpack.c.0.s8 %v532
        %v534 = vlaneseq
        %v535 = vshrl.u32 %v534, 7
        %v536 = vsub.s32 %v533, %v535
        %v537 = vrot.slane %v530, %v536
        %v539 = vlaneseq
        %vm540 = vcmp.ge.s32.totalorder %v539, 0
        %vm541 = vcmp.lt.s32.totalorder %v539, 256
        %vm542 = vmand %vm540, %vm541
        %543 = vst.msk [vmem:[%s151] ss:$4 sm:$0x3] %vm542, %v537
        %v544 = vmul.f32 %v469, %v265
        %v545 = vmul.f32 %v471, %v266
        %v546 = vmul.f32 %v475, %v267
        %v547 = vmul.f32 %v477, %v268
        %v548 = vadd.f32 %v544, %v546
        %v549 = vrot.slane %v548, 4
        %v550 = vadd.f32 %v548, %v549
        %v551 = vrot.slane %v550, 2
        %v552 = vadd.f32 %v550, %v551
        %v553 = vrot.slane %v552, 1
        %v554 = vadd.f32 %v552, %v553
        %v555 = vadd.f32 %v545, %v547
        %v556 = vrot.slane %v555, 4
        %v557 = vadd.f32 %v555, %v556
        %v558 = vrot.slane %v557, 2
        %v559 = vadd.f32 %v557, %v558
        %v560 = vrot.slane %v559, 1
        %v561 = vadd.f32 %v559, %v560
        %v564 = vcombine.low %v554, %v561
        %v566 = vunpack.c.l.s4 1966171168
        %v567 = vunpack.c.0.s8 %v566
        %v568 = vlaneseq
        %v569 = vshrl.u32 %v568, 7
        %v570 = vsub.s32 %v567, %v569
        %v571 = vrot.slane %v564, %v570
        %v573 = vunpack.c.l.s4 1966171168
        %v574 = vunpack.c.0.s8 %v573
        %v575 = vlaneseq
        %v576 = vshrl.u32 %v575, 7
        %v577 = vsub.s32 %v574, %v576
        %v578 = vrot.slane %v571, %v577
        %s580 = scalar_lea.vmem %s151, 1 [#allocation2]
        %581 = vst.msk [vmem:[%s580] ss:$4 sm:$0x3] %vm542, %v578
        %v582 = vmul.f32 %v481, %v265
        %v583 = vmul.f32 %v483, %v266
        %v584 = vmul.f32 %v487, %v267
        %v585 = vmul.f32 %v489, %v268
        %v586 = vadd.f32 %v582, %v584
        %v587 = vrot.slane %v586, 4
        %v588 = vadd.f32 %v586, %v587
        %v589 = vrot.slane %v588, 2
        %v590 = vadd.f32 %v588, %v589
        %v591 = vrot.slane %v590, 1
        %v592 = vadd.f32 %v590, %v591
        %v593 = vadd.f32 %v583, %v585
        %v594 = vrot.slane %v593, 4
        %v595 = vadd.f32 %v593, %v594
        %v596 = vrot.slane %v595, 2
        %v597 = vadd.f32 %v595, %v596
        %v598 = vrot.slane %v597, 1
        %v599 = vadd.f32 %v597, %v598
        %v602 = vcombine.low %v592, %v599
        %v604 = vunpack.c.l.s4 1966171168
        %v605 = vunpack.c.0.s8 %v604
        %v606 = vlaneseq
        %v607 = vshrl.u32 %v606, 7
        %v608 = vsub.s32 %v605, %v607
        %v609 = vrot.slane %v602, %v608
        %v611 = vunpack.c.l.s4 1966171168
        %v612 = vunpack.c.0.s8 %v611
        %v613 = vlaneseq
        %v614 = vshrl.u32 %v613, 7
        %v615 = vsub.s32 %v612, %v614
        %v616 = vrot.slane %v609, %v615
        %s618 = scalar_lea.vmem %s151, 2 [#allocation2]
        %619 = vst.msk [vmem:[%s618] ss:$4 sm:$0x3] %vm542, %v616
        %v620 = vmul.f32 %v493, %v265
        %v621 = vmul.f32 %v495, %v266
        %v622 = vmul.f32 %v499, %v267
        %v623 = vmul.f32 %v501, %v268
        %v624 = vadd.f32 %v620, %v622
        %v625 = vrot.slane %v624, 4
        %v626 = vadd.f32 %v624, %v625
        %v627 = vrot.slane %v626, 2
        %v628 = vadd.f32 %v626, %v627
        %v629 = vrot.slane %v628, 1
        %v630 = vadd.f32 %v628, %v629
        %v631 = vadd.f32 %v621, %v623
        %v632 = vrot.slane %v631, 4
        %v633 = vadd.f32 %v631, %v632
        %v634 = vrot.slane %v633, 2
        %v635 = vadd.f32 %v633, %v634
        %v636 = vrot.slane %v635, 1
        %v637 = vadd.f32 %v635, %v636
        %v640 = vcombine.low %v630, %v637
        %v642 = vunpack.c.l.s4 1966171168
        %v643 = vunpack.c.0.s8 %v642
        %v644 = vlaneseq
        %v645 = vshrl.u32 %v644, 7
        %v646 = vsub.s32 %v643, %v645
        %v647 = vrot.slane %v640, %v646
        %v649 = vunpack.c.l.s4 1966171168
        %v650 = vunpack.c.0.s8 %v649
        %v651 = vlaneseq
        %v652 = vshrl.u32 %v651, 7
        %v653 = vsub.s32 %v650, %v652
        %v654 = vrot.slane %v647, %v653
        %s656 = scalar_lea.vmem %s151, 3 [#allocation2]
        %657 = vst.msk [vmem:[%s656] ss:$4 sm:$0x3] %vm542, %v654
        %s658 = sand.u32 %s76, 1
        %s659 = scalar_lea.sflag [#allocation3], %s658
        %s660 = sand.u32 %s76, 1
        %s661 = smul.addr %s660, 8
        %s662 = scalar_lea.vmem [#allocation2], %s661
        // Predicated region
        $region29: #{tpu_custom_call.1} parent=27 // pred_check
          %p663 = pneg %p86
        $region30: #{tpu_custom_call.1} parent=27 // pred_check_branch
          %665 = sbr.rel (%p663) target = $region32
        $region31: #{tpu_custom_call.1} parent=27 // pred_region
          %s667 = ssub.s32 128, 128
          %668 = vsyncadd %s659, %s667
          %s669 = smul.addr %s16, 2
          %s670 = smul.addr %s669, 64
          %s671 = scalar_lea.hbm %s2, %s670
          %s673 = sshll.u32 %s662, 4
          %s674 = int_to_ptr.vmem [resolvable:$true] %s673
          %676 = dma.vmem_to_hbm [thread:$0]  %s674, 128, %s671, %s659
        $region32: #{tpu_custom_call.1} parent=27 // pred_fallthru
          _
      $region28: #{tpu_custom_call.1} parent=5 // pred_fallthru
        _
      %p677 = scmp.le.s32.totalorder 2, %s11
      // Predicated region
      $region33: #{tpu_custom_call.1} parent=5 // pred_check
        %p678 = pneg %p677
      $region34: #{tpu_custom_call.1} parent=5 // pred_check_branch
        %680 = sbr.rel (%p678) target = $region36
      $region35: #{tpu_custom_call.1} parent=5 // pred_region
        %s681 = ssub.s32 %s11, 2
        // Predicated region
        $region37: #{tpu_custom_call.1} parent=35 // pred_check
          %p682 = pneg %p92
        $region38: #{tpu_custom_call.1} parent=35 // pred_check_branch
          %684 = sbr.rel (%p682) target = $region40
        $region39: #{tpu_custom_call.1} parent=35 // pred_region
          %s685 = sand.u32 %s77, 1
          %s686 = scalar_lea.sflag [#allocation3], %s685
          %s687 = sand.u32 %s77, 1
          %s688 = smul.addr %s687, 8
          %s689 = scalar_lea.vmem [#allocation2], %s688
          %690 = dma.done %s686, 128
        $region40: #{tpu_custom_call.1} parent=35 // pred_fallthru
          _
      $region36: #{tpu_custom_call.1} parent=5 // pred_fallthru
        _
    $region6: #{tpu_custom_call.1} parent=1 // loop_footer
      %s15 = sadd.s32 1, %s11
    $region7: #{tpu_custom_call.1} parent=1 // loop_footer_branch
      %10 = sbr.rel target = $region3
    $region8: #{tpu_custom_call.1} parent=1 // loop_exit
      _
    %691 = vsyncpa [#allocation3], 1
    %s692 = scalar_lea.sflag [#allocation3], 1
    %693 = vsyncpa %s692, 1

</llo_original>
